<compile_context>
chip_gen: v7x
topology: tpu7x:2x2x1
jax: 0.10.0
libtpu: 0.0.40
codegen_flags: <defaults>
</compile_context>

<pallas_src>
import functools

import jax
import jax.numpy as jnp
from jax import lax
from jax.experimental import pallas as pl
from jax.experimental.pallas import tpu as pltpu


# ---------------------------------------------------------------------------
# Hardware-derived knobs
# ---------------------------------------------------------------------------

def _round_up(x, m):
    return ((x + m - 1) // m) * m


def _tpu_vmem_bytes():
    try:
        return int(pltpu.get_tpu_info().vmem_capacity_bytes)
    except Exception:
        try:
            kind = jax.devices()[0].device_kind.lower()
        except Exception:
            return 64 * (1 << 20)
        return 64 * (1 << 20) if "7" in kind else 128 * (1 << 20)


def _vmem_budgets():
    cap = _tpu_vmem_bytes()
    # 128 MiB chips (v5e/v6e): ~76 MiB tile budget, ~108 MiB scoped limit.
    #  64 MiB chips (v7x)    : ~38 MiB tile budget, ~54 MiB scoped limit
    #                          (headroom for Mosaic internal scratch/semaphores).
    budget = int(cap * 0.60)
    limit = min(int(cap * 0.85), cap - (8 << 20))
    return budget, limit


def _gate_dtype():
    # bf16 gate nonlinearities on v6e/v7x (~2x EUP throughput); f32 on v5e and
    # older chips which have no bf16 VPU/EUP.
    try:
        kind = jax.devices()[0].device_kind.lower()
    except Exception:
        return jnp.float32
    if any(tag in kind for tag in ("v2", "v3", "v4", "v5")):
        return jnp.float32
    return jnp.bfloat16


# ---------------------------------------------------------------------------
# In-kernel recurrence (shared by both LSTM kernels)
# ---------------------------------------------------------------------------

def _sigmoid_t(x):
    # sigmoid(x) = 0.5*tanh(0.5*x) + 0.5 : one EUP push instead of exp + recip.
    return 0.5 * jnp.tanh(0.5 * x) + 0.5


def _lstm_tile_recurrence(x_ref, len_ref, wih_ref, whh_ref, b_ref, xw_ref,
                          n_steps, gate_dtype):
    """Runs the LSTM over one (T, TN, E) tile; returns (TN, Hp) final hidden.

    Gate order matches PyTorch: i, f, g, o. Each gate occupies a 128-aligned
    Hp-wide lane block.
    """
    t_steps, tn, e = x_ref.shape
    hp = whh_ref.shape[0]

    whh = whh_ref[...]                       # (Hp, 4Hp) bf16
    bias = b_ref[...]                        # (1, 4Hp)  f32
    lens = len_ref[...]                      # (TN, 1)   int32

    # Hoisted input projection: one big MXU GEMM over every timestep in the
    # tile (no sequential dependence); stored bf16 to halve the scratch.
    x_all = x_ref[...].reshape(t_steps * tn, e)
    xw = jnp.dot(x_all, wih_ref[...], preferred_element_type=jnp.float32)
    xw_ref[...] = xw.reshape(t_steps, tn, 4 * hp).astype(jnp.bfloat16)

    def step(t, carry):
        h, c = carry
        gates = (xw_ref[t].astype(jnp.float32) + bias
                 + jnp.dot(h.astype(jnp.bfloat16), whh,
                           preferred_element_type=jnp.float32))
        g = gates.astype(gate_dtype)
        i_g = _sigmoid_t(g[:, 0:hp])
        f_g = _sigmoid_t(g[:, hp:2 * hp])
        g_g = jnp.tanh(g[:, 2 * hp:3 * hp])
        o_g = _sigmoid_t(g[:, 3 * hp:4 * hp])
        c_new = (f_g.astype(jnp.float32) * c
                 + i_g.astype(jnp.float32) * g_g.astype(jnp.float32))
        h_new = (o_g.astype(jnp.float32)
                 * jnp.tanh(c_new.astype(gate_dtype)).astype(jnp.float32))
        valid = lens > t                      # (TN, 1) bool
        return jnp.where(valid, h_new, h), jnp.where(valid, c_new, c)

    h0 = jnp.zeros((tn, hp), jnp.float32)
    c0 = jnp.zeros((tn, hp), jnp.float32)
    # Dynamic trip count: only iterate up to this tile's longest valid row.
    # TODO(synk): sorting/bucketing rows by length in the wrapper would make
    # tiles length-homogeneous and shave the remaining padded steps.
    h_final, _ = lax.fori_loop(0, n_steps, step, (h0, c0))
    return h_final


# ---------------------------------------------------------------------------
# Pallas kernels
# ---------------------------------------------------------------------------

def _lstm_last_hidden_kernel(tmax_ref, x_ref, len_ref, wih_ref, whh_ref, b_ref,
                             h_out_ref, xw_ref, *, gate_dtype):
    """Token-level LSTM: hidden state at each row's last valid step (bf16)."""
    h_out_ref[...] = jnp.zeros(h_out_ref.shape, h_out_ref.dtype)
    n_steps = tmax_ref[pl.program_id(0)]

    @pl.when(n_steps > 0)
    def _():
        h_final = _lstm_tile_recurrence(x_ref, len_ref, wih_ref, whh_ref,
                                        b_ref, xw_ref, n_steps, gate_dtype)
        h_out_ref[...] = h_final.astype(h_out_ref.dtype)


def _lstm_proj_kernel(tmax_ref, x_ref, len_ref, wih_ref, whh_ref, b_ref,
                      lw_ref, lb_ref, o_ref, xw_ref, *, gate_dtype):
    """Instruction-level LSTM with the final Linear(H -> 1) fused in.

    Output tile is a lane-dense (1, 1, TN) row (unmasked stores)."""
    o_ref[...] = jnp.broadcast_to(lb_ref[...], o_ref.shape).astype(o_ref.dtype)
    n_steps = tmax_ref[pl.program_id(0)]

    @pl.when(n_steps > 0)
    def _():
        h_final = _lstm_tile_recurrence(x_ref, len_ref, wih_ref, whh_ref,
                                        b_ref, xw_ref, n_steps, gate_dtype)
        # (1, Hp) x (TN, Hp)^T -> (1, TN): lane-dense projection row.
        proj = lax.dot_general(lw_ref[...], h_final,
                               (((1,), (1,)), ((), ())),
                               preferred_element_type=jnp.float32)
        o_ref[...] = (proj + lb_ref[...]).reshape(o_ref.shape)


# ---------------------------------------------------------------------------
# Wrappers
# ---------------------------------------------------------------------------

def _pad_gate_weights(wih, whh, bias, e_in, hp):
    """Pad each gate block to Hp (128-aligned) and the input dim to e_in."""
    e0, four_h = wih.shape
    h = four_h // 4
    if hp == h and e_in == e0:
        return wih, whh, bias
    wih_p = jnp.zeros((e_in, 4, hp), wih.dtype).at[:e0, :, :h].set(
        wih.reshape(e0, 4, h)).reshape(e_in, 4 * hp)
    whh_p = jnp.zeros((hp, 4, hp), whh.dtype).at[:h, :, :h].set(
        whh.reshape(h, 4, h)).reshape(hp, 4 * hp)
    b_p = jnp.zeros((1, 4, hp), bias.dtype).at[:, :, :h].set(
        bias.reshape(1, 4, h)).reshape(1, 4 * hp)
    return wih_p, whh_p, b_p


def _choose_row_tile(n, t, e, hp, budget_bytes, max_rows=1024):
    weight_bytes = 2 * ((e * 4 * hp + hp * 4 * hp) * 2 + 4 * hp * 4)
    avail = max(budget_bytes - weight_bytes - (2 << 20), 1 << 20)
    per_row = (2 * t * e * 2        # double-buffered bf16 x tile
               + 2 * hp * 2 + 8     # double-buffered output tile
               + t * 4 * hp * 2     # bf16 XW scratch (single buffer)
               + 64 * hp)           # live h/c/gate values in f32
    tn = int(avail // max(per_row, 1))
    tn = max(16, min(max_rows, (tn // 16) * 16))
    if n > 16:
        # Guarantee >= 2 row tiles so ("parallel",) can feed both v7x TCs.
        tn = min(tn, _round_up((n + 1) // 2, 16))
    tn = min(tn, _round_up(n, 16))
    return tn


def _lstm_call(x_tm, lengths, wih, whh, bias, *, lin_w=None, lin_b=None):
    """Row-tiled pallas_call over time-major x_tm (T, N, E).

    Returns (N, Hp) bf16 last-hidden states, or (N, 1) f32 when lin_w/lin_b
    are given (fused final Linear)."""
    t, n, e = x_tm.shape
    h = whh.shape[0]
    hp = _round_up(h, 128)                       # 128-lane-aligned gate blocks

    wih_p, whh_p, b_p = _pad_gate_weights(wih, whh, bias, e_in=e, hp=hp)
    wih_b = wih_p.astype(jnp.bfloat16)
    whh_b = whh_p.astype(jnp.bfloat16)
    b_f = b_p.astype(jnp.float32)

    gate_dtype = _gate_dtype()
    budget, vmem_limit = _vmem_budgets()
    tn = _choose_row_tile(n, t, e, hp, budget)
    n_pad = _round_up(n, tn)
    num_tiles = n_pad // tn

    x_tm = x_tm.astype(jnp.bfloat16)
    lengths = lengths.astype(jnp.int32)
    if n_pad != n:
        x_tm = jnp.pad(x_tm, ((0, 0), (0, n_pad - n), (0, 0)))
        lengths = jnp.pad(lengths, (0, n_pad - n))
    lens2d = lengths.reshape(n_pad, 1)
    # Per-tile max length -> SMEM scalar prefetch (empty-tile skip + dynamic
    # recurrence trip count).
    tile_max = jnp.max(lens2d.reshape(num_tiles, tn), axis=1)

    # TODO(synk): pipeline_mode=pl.Buffered(1) on the pinned weight specs would
    # halve their VMEM footprint; omitted to stay compile-safe across versions.
    base_specs = [
        pl.BlockSpec((t, tn, e), lambda i, *_: (0, i, 0)),        # x tile
        pl.BlockSpec((tn, 1), lambda i, *_: (i, 0)),              # lengths tile
        pl.BlockSpec((e, 4 * hp), lambda i, *_: (0, 0)),          # W_ih (pinned)
        pl.BlockSpec((hp, 4 * hp), lambda i, *_: (0, 0)),         # W_hh (pinned)
        pl.BlockSpec((1, 4 * hp), lambda i, *_: (0, 0)),          # bias  (pinned)
    ]
    scratch = [pltpu.VMEM((t, tn, 4 * hp), jnp.bfloat16)]         # bf16 XW
    cparams = pltpu.CompilerParams(
        dimension_semantics=("parallel",), vmem_limit_bytes=vmem_limit)

    if lin_w is None:
        grid_spec = pltpu.PrefetchScalarGridSpec(
            num_scalar_prefetch=1, grid=(num_tiles,),
            in_specs=base_specs,
            out_specs=pl.BlockSpec((tn, hp), lambda i, *_: (i, 0)),
            scratch_shapes=scratch)
        out = pl.pallas_call(
            functools.partial(_lstm_last_hidden_kernel, gate_dtype=gate_dtype),
            out_shape=jax.ShapeDtypeStruct((n_pad, hp), jnp.bfloat16),
            grid_spec=grid_spec, compiler_params=cparams,
        )(tile_max, x_tm, lens2d, wih_b, whh_b, b_f)
        return out[:n]                                           # (N, Hp) bf16

    lw_row = jnp.zeros((1, hp), jnp.float32).at[0, :h].set(
        lin_w.reshape(-1).astype(jnp.float32))
    lb = jnp.asarray(lin_b, jnp.float32).reshape(1, 1)
    extra_specs = [
        pl.BlockSpec((1, hp), lambda i, *_: (0, 0)),              # lin_w (pinned)
        pl.BlockSpec((1, 1), lambda i, *_: (0, 0)),               # lin_b (pinned)
    ]
    grid_spec = pltpu.PrefetchScalarGridSpec(
        num_scalar_prefetch=1, grid=(num_tiles,),
        in_specs=base_specs + extra_specs,
        out_specs=pl.BlockSpec((1, 1, tn), lambda i, *_: (i, 0, 0)),
        scratch_shapes=scratch)
    out = pl.pallas_call(
        functools.partial(_lstm_proj_kernel, gate_dtype=gate_dtype),
        out_shape=jax.ShapeDtypeStruct((num_tiles, 1, tn), jnp.float32),
        grid_spec=grid_spec, compiler_params=cparams,
    )(tile_max, x_tm, lens2d, wih_b, whh_b, b_f, lw_row, lb)
    return out.reshape(n_pad)[:n].reshape(n, 1)                  # (N, 1) f32


# ---------------------------------------------------------------------------
# Model
# ---------------------------------------------------------------------------

def init_params(key, vocab_size, embedding_size, hidden_size, padding_idx=0):
    ks = jax.random.split(key, 11)
    k = 1.0 / jnp.sqrt(hidden_size)

    emb = jax.random.normal(ks[0], (vocab_size, embedding_size), jnp.float32)
    emb = emb.at[padding_idx].set(0.0)   # nn.Embedding padding_idx row is zero

    def u(kk, shape):
        return jax.random.uniform(kk, shape, jnp.float32, -k, k)

    return {
        "embedding": emb,
        # token_rnn: LSTM(embedding_size -> hidden_size), weights pre-transposed
        "tok_wih": u(ks[1], (embedding_size, 4 * hidden_size)),
        "tok_whh": u(ks[2], (hidden_size, 4 * hidden_size)),
        "tok_b": u(ks[3], (1, 4 * hidden_size)) + u(ks[4], (1, 4 * hidden_size)),
        # instr_rnn: LSTM(hidden_size -> hidden_size)
        "ins_wih": u(ks[5], (hidden_size, 4 * hidden_size)),
        "ins_whh": u(ks[6], (hidden_size, 4 * hidden_size)),
        "ins_b": u(ks[7], (1, 4 * hidden_size)) + u(ks[8], (1, 4 * hidden_size)),
        # linear: hidden_size -> 1
        "lin_w": u(ks[9], (hidden_size, 1)),
        "lin_b": u(ks[10], (1, 1)),
    }


def ithemal_forward(params, batched_blocks, actual_instr_counts,
                    actual_token_counts):
    """Mirrors Ithemal.forward. Returns (batch_size, 1) float32."""
    B, I, T = batched_blocks.shape

    # Embedding gather straight into time-major bf16 (no HBM transpose of the
    # big (N, T, E) activation; half the intermediate traffic).
    emb_bf = params["embedding"].astype(jnp.bfloat16)
    ids_tm = jnp.transpose(batched_blocks.reshape(B * I, T), (1, 0))   # (T, B*I)
    x_tm = jnp.take(emb_bf, ids_tm, axis=0)                    # (T, B*I, E) bf16

    # Token-level LSTM; rows with 0 tokens stay zero (matches torch scatter).
    token_lengths = actual_token_counts.reshape(B * I)
    instr_repr = _lstm_call(x_tm, token_lengths,
                            params["tok_wih"], params["tok_whh"],
                            params["tok_b"])                    # (B*I, Hp) bf16
    hp = instr_repr.shape[-1]
    instr_tm = jnp.transpose(instr_repr.reshape(B, I, hp), (1, 0, 2))  # (I, B, Hp)

    # Instruction-level LSTM over each block + fused final linear projection.
    return _lstm_call(instr_tm, actual_instr_counts,
                      params["ins_wih"], params["ins_whh"], params["ins_b"],
                      lin_w=params["lin_w"], lin_b=params["lin_b"])    # (B, 1)


# ---------------------------------------------------------------------------
# Demo
# ---------------------------------------------------------------------------

if __name__ == "__main__":
    VOCAB, EMB, HID = 64, 16, 32
    B, MAX_INSTR, MAX_TOK = 2, 8, 8

    key = jax.random.PRNGKey(0)
    k_par, k_tok, k_ic, k_tc = jax.random.split(key, 4)

    params = init_params(k_par, VOCAB, EMB, HID, padding_idx=0)

    # Deterministic synthetic inputs.
    blocks = jax.random.randint(k_tok, (B, MAX_INSTR, MAX_TOK), 1, VOCAB,
                                dtype=jnp.int32)
    instr_counts = jax.random.randint(k_ic, (B,), 1, MAX_INSTR + 1,
                                      dtype=jnp.int32)          # >= 1 per block
    token_counts = jax.random.randint(k_tc, (B, MAX_INSTR), 1, MAX_TOK + 1,
                                      dtype=jnp.int32)
    # Instructions beyond a block's actual count have 0 tokens (padding rows).
    instr_valid = (jnp.arange(MAX_INSTR)[None, :] < instr_counts[:, None])
    token_counts = jnp.where(instr_valid, token_counts, 0)
    # Zero out padded token ids (padding_idx = 0), as a real batch would have.
    tok_valid = (jnp.arange(MAX_TOK)[None, None, :] < token_counts[:, :, None])
    blocks = jnp.where(tok_valid, blocks, 0)

    out = ithemal_forward(params, blocks, instr_counts, token_counts)
    out = jax.block_until_ready(out)
    assert out.shape == (B, 1) and out.dtype == jnp.float32
    assert bool(jnp.all(jnp.isfinite(out)))
    print("KERNEL_OK")
</pallas_src>

<mosaic_0001>
module attributes {stable_mosaic.version = 11 : i64} {
  func.func @_lstm_last_hidden_kernel(%arg0: i32, %arg1: memref<1xi32, #tpu.memory_space<smem>>, %arg2: memref<8x16x16xbf16, #tpu.memory_space<vmem>>, %arg3: memref<16x1xi32, #tpu.memory_space<vmem>>, %arg4: memref<16x512xbf16, #tpu.memory_space<vmem>>, %arg5: memref<128x512xbf16, #tpu.memory_space<vmem>>, %arg6: memref<1x512xf32, #tpu.memory_space<vmem>>, %arg7: memref<16x128xbf16, #tpu.memory_space<vmem>>, %arg8: memref<8x16x512xbf16, #tpu.memory_space<vmem>>) attributes {dimension_semantics = [#tpu.dimension_semantics<parallel>], iteration_bounds = array<i64: 1>, scalar_prefetch = 1 : i64, scratch_operands = 1 : i64, tpu.core_type = #tpu.core_type<tc>, window_params = [{transform_indices = @transform_0, window_bounds = array<i64: 8, 16, 16>}, {transform_indices = @transform_1, window_bounds = array<i64: 16, 1>}, {pipeline_mode = #tpu.pipeline_mode<synchronous>, transform_indices = @transform_2, window_bounds = array<i64: 16, 512>}, {pipeline_mode = #tpu.pipeline_mode<synchronous>, transform_indices = @transform_3, window_bounds = array<i64: 128, 512>}, {pipeline_mode = #tpu.pipeline_mode<synchronous>, transform_indices = @transform_4, window_bounds = array<i64: 1, 512>}, {transform_indices = @transform_5, window_bounds = array<i64: 16, 128>}]} {
    %cst = arith.constant 0.000000e+00 : bf16
    %0 = vector.broadcast %cst : bf16 to vector<16x128xbf16>
    %c0 = arith.constant 0 : index
    %c0_0 = arith.constant 0 : index
    %1 = vector.load %arg7[%c0, %c0_0] : memref<16x128xbf16, #tpu.memory_space<vmem>>, vector<16x128xbf16>
    tpu.vector_store %arg7[%c0, %c0_0], %0 {strides = array<i32>} : memref<16x128xbf16, #tpu.memory_space<vmem>>, vector<16x128xbf16>,
    %2 = arith.index_cast %arg0 : i32 to index
    %3 = memref.load %arg1[%2] : memref<1xi32, #tpu.memory_space<smem>>
    %c0_i32 = arith.constant 0 : i32
    %4 = arith.cmpi sgt, %3, %c0_i32 : i32
    %5 = arith.extui %4 : i1 to i32
    %c0_i32_1 = arith.constant 0 : i32
    %6 = arith.cmpi ne, %5, %c0_i32_1 : i32
    scf.if %6 {
      %c0_2 = arith.constant 0 : index
      %c0_3 = arith.constant 0 : index
      %7 = vector.load %arg5[%c0_2, %c0_3] : memref<128x512xbf16, #tpu.memory_space<vmem>>, vector<128x512xbf16>
      %c0_4 = arith.constant 0 : index
      %c0_5 = arith.constant 0 : index
      %8 = vector.load %arg6[%c0_4, %c0_5] : memref<1x512xf32, #tpu.memory_space<vmem>>, vector<1x512xf32>
      %c0_6 = arith.constant 0 : index
      %c0_7 = arith.constant 0 : index
      %9 = vector.load %arg3[%c0_6, %c0_7] : memref<16x1xi32, #tpu.memory_space<vmem>>, vector<16x1xi32>
      %c0_8 = arith.constant 0 : index
      %c0_9 = arith.constant 0 : index
      %c0_10 = arith.constant 0 : index
      %10 = vector.load %arg2[%c0_8, %c0_9, %c0_10] : memref<8x16x16xbf16, #tpu.memory_space<vmem>>, vector<8x16x16xbf16>
      %11 = vector.shape_cast %10 : vector<8x16x16xbf16> to vector<128x16xbf16>
      %c0_11 = arith.constant 0 : index
      %c0_12 = arith.constant 0 : index
      %12 = vector.load %arg4[%c0_11, %c0_12] : memref<16x512xbf16, #tpu.memory_space<vmem>>, vector<16x512xbf16>
      %cst_13 = arith.constant dense<0.000000e+00> : vector<128x512xf32>
      %13 = tpu.matmul %11, %12, %cst_13 {dimension_numbers = #tpu.dot_dimension_numbers<[1], [0], [0], [1], [0, 0, 1, 1], [], []>} : vector<128x16xbf16>, vector<16x512xbf16>, vector<128x512xf32> -> vector<128x512xf32>
      %14 = vector.shape_cast %13 : vector<128x512xf32> to vector<8x16x512xf32>
      %15 = arith.truncf %14 : vector<8x16x512xf32> to vector<8x16x512xbf16>
      %c0_14 = arith.constant 0 : index
      %c0_15 = arith.constant 0 : index
      %c0_16 = arith.constant 0 : index
      %16 = vector.load %arg8[%c0_14, %c0_15, %c0_16] : memref<8x16x512xbf16, #tpu.memory_space<vmem>>, vector<8x16x512xbf16>
      tpu.vector_store %arg8[%c0_14, %c0_15, %c0_16], %15 {strides = array<i32>} : memref<8x16x512xbf16, #tpu.memory_space<vmem>>, vector<8x16x512xbf16>,
      %cst_17 = arith.constant 0.000000e+00 : f32
      %17 = vector.broadcast %cst_17 : f32 to vector<16x128xf32>
      %cst_18 = arith.constant 0.000000e+00 : f32
      %18 = vector.broadcast %cst_18 : f32 to vector<16x128xf32>
      %c0_i32_19 = arith.constant 0 : i32
      %19 = arith.subi %3, %c0_i32_19 : i32
      %20 = arith.addi %c0_i32_19, %19 : i32
      %c1_i32 = arith.constant 1 : i32
      %21:2 = scf.for %arg9 = %c0_i32_19 to %20 step %c1_i32 iter_args(%arg10 = %17, %arg11 = %18) -> (vector<16x128xf32>, vector<16x128xf32>)  : i32 {
        %24 = arith.index_cast %arg9 : i32 to index
        %c0_22 = arith.constant 0 : index
        %c0_23 = arith.constant 0 : index
        %25 = vector.load %arg8[%24, %c0_22, %c0_23] : memref<8x16x512xbf16, #tpu.memory_space<vmem>>, vector<1x16x512xbf16>
        %26 = vector.shape_cast %25 : vector<1x16x512xbf16> to vector<16x512xbf16>
        %27 = arith.extf %26 : vector<16x512xbf16> to vector<16x512xf32>
        %28 = vector.broadcast %8 : vector<1x512xf32> to vector<16x512xf32>
        %29 = arith.addf %27, %28 : vector<16x512xf32>
        %30 = arith.truncf %arg10 : vector<16x128xf32> to vector<16x128xbf16>
        %cst_24 = arith.constant dense<0.000000e+00> : vector<16x512xf32>
        %31 = tpu.matmul %30, %7, %cst_24 {dimension_numbers = #tpu.dot_dimension_numbers<[1], [0], [0], [1], [0, 0, 1, 1], [], []>} : vector<16x128xbf16>, vector<128x512xbf16>, vector<16x512xf32> -> vector<16x512xf32>
        %32 = arith.addf %29, %31 : vector<16x512xf32>
        %33 = arith.truncf %32 : vector<16x512xf32> to vector<16x512xbf16>
        %34 = vector.extract_strided_slice %33 {offsets = [0, 0], sizes = [16, 128], strides = [1, 1]} : vector<16x512xbf16> to vector<16x128xbf16>
        %cst_25 = arith.constant 5.000000e-01 : bf16
        %35 = vector.broadcast %cst_25 : bf16 to vector<16x128xbf16>
        %36 = arith.mulf %35, %34 : vector<16x128xbf16>
        %37 = math.tanh %36 : vector<16x128xbf16>
        %cst_26 = arith.constant 5.000000e-01 : bf16
        %38 = vector.broadcast %cst_26 : bf16 to vector<16x128xbf16>
        %39 = arith.mulf %38, %37 : vector<16x128xbf16>
        %cst_27 = arith.constant 5.000000e-01 : bf16
        %40 = vector.broadcast %cst_27 : bf16 to vector<16x128xbf16>
        %41 = arith.addf %39, %40 : vector<16x128xbf16>
        %42 = vector.extract_strided_slice %33 {offsets = [0, 128], sizes = [16, 128], strides = [1, 1]} : vector<16x512xbf16> to vector<16x128xbf16>
        %cst_28 = arith.constant 5.000000e-01 : bf16
        %43 = vector.broadcast %cst_28 : bf16 to vector<16x128xbf16>
        %44 = arith.mulf %43, %42 : vector<16x128xbf16>
        %45 = math.tanh %44 : vector<16x128xbf16>
        %cst_29 = arith.constant 5.000000e-01 : bf16
        %46 = vector.broadcast %cst_29 : bf16 to vector<16x128xbf16>
        %47 = arith.mulf %46, %45 : vector<16x128xbf16>
        %cst_30 = arith.constant 5.000000e-01 : bf16
        %48 = vector.broadcast %cst_30 : bf16 to vector<16x128xbf16>
        %49 = arith.addf %47, %48 : vector<16x128xbf16>
        %50 = vector.extract_strided_slice %33 {offsets = [0, 256], sizes = [16, 128], strides = [1, 1]} : vector<16x512xbf16> to vector<16x128xbf16>
        %51 = math.tanh %50 : vector<16x128xbf16>
        %52 = vector.extract_strided_slice %33 {offsets = [0, 384], sizes = [16, 128], strides = [1, 1]} : vector<16x512xbf16> to vector<16x128xbf16>
        %cst_31 = arith.constant 5.000000e-01 : bf16
        %53 = vector.broadcast %cst_31 : bf16 to vector<16x128xbf16>
        %54 = arith.mulf %53, %52 : vector<16x128xbf16>
        %55 = math.tanh %54 : vector<16x128xbf16>
        %cst_32 = arith.constant 5.000000e-01 : bf16
        %56 = vector.broadcast %cst_32 : bf16 to vector<16x128xbf16>
        %57 = arith.mulf %56, %55 : vector<16x128xbf16>
        %cst_33 = arith.constant 5.000000e-01 : bf16
        %58 = vector.broadcast %cst_33 : bf16 to vector<16x128xbf16>
        %59 = arith.addf %57, %58 : vector<16x128xbf16>
        %60 = arith.extf %49 : vector<16x128xbf16> to vector<16x128xf32>
        %61 = arith.mulf %60, %arg11 : vector<16x128xf32>
        %62 = arith.extf %41 : vector<16x128xbf16> to vector<16x128xf32>
        %63 = arith.extf %51 : vector<16x128xbf16> to vector<16x128xf32>
        %64 = arith.mulf %62, %63 : vector<16x128xf32>
        %65 = arith.addf %61, %64 : vector<16x128xf32>
        %66 = arith.extf %59 : vector<16x128xbf16> to vector<16x128xf32>
        %67 = arith.truncf %65 : vector<16x128xf32> to vector<16x128xbf16>
        %68 = math.tanh %67 : vector<16x128xbf16>
        %69 = arith.extf %68 : vector<16x128xbf16> to vector<16x128xf32>
        %70 = arith.mulf %66, %69 : vector<16x128xf32>
        %71 = vector.broadcast %arg9 : i32 to vector<16x1xi32>
        %72 = arith.cmpi sgt, %9, %71 : vector<16x1xi32>
        %73 = vector.shape_cast %72 : vector<16x1xi1> to vector<16x1xi1>
        %74 = vector.broadcast %73 : vector<16x1xi1> to vector<16x128xi1>
        %75 = arith.select %74, %70, %arg10 : vector<16x128xi1>, vector<16x128xf32>
        %76 = vector.shape_cast %72 : vector<16x1xi1> to vector<16x1xi1>
        %77 = vector.broadcast %76 : vector<16x1xi1> to vector<16x128xi1>
        %78 = arith.select %77, %65, %arg11 : vector<16x128xi1>, vector<16x128xf32>
        scf.yield %75, %78 : vector<16x128xf32>, vector<16x128xf32>
      }
      %22 = arith.truncf %21#0 : vector<16x128xf32> to vector<16x128xbf16>
      %c0_20 = arith.constant 0 : index
      %c0_21 = arith.constant 0 : index
      %23 = vector.load %arg7[%c0_20, %c0_21] : memref<16x128xbf16, #tpu.memory_space<vmem>>, vector<16x128xbf16>
      tpu.vector_store %arg7[%c0_20, %c0_21], %22 {strides = array<i32>} : memref<16x128xbf16, #tpu.memory_space<vmem>>, vector<16x128xbf16>,
    } else {
    }
    return
  }
  func.func @transform_0(%arg0: i32, %arg1: memref<1xi32, #tpu.memory_space<smem>>) -> (i32, i32, i32) {
    %c0_i32 = arith.constant 0 : i32
    %c0_i32_0 = arith.constant 0 : i32
    %c0_i32_1 = arith.constant 0 : i32
    return %c0_i32, %arg0, %c0_i32_0 : i32, i32, i32
  }
  func.func @transform_1(%arg0: i32, %arg1: memref<1xi32, #tpu.memory_space<smem>>) -> (i32, i32) {
    %c0_i32 = arith.constant 0 : i32
    %c0_i32_0 = arith.constant 0 : i32
    return %arg0, %c0_i32 : i32, i32
  }
  func.func @transform_2(%arg0: i32, %arg1: memref<1xi32, #tpu.memory_space<smem>>) -> (i32, i32) {
    %c0_i32 = arith.constant 0 : i32
    %c0_i32_0 = arith.constant 0 : i32
    %c0_i32_1 = arith.constant 0 : i32
    return %c0_i32, %c0_i32_0 : i32, i32
  }
  func.func @transform_3(%arg0: i32, %arg1: memref<1xi32, #tpu.memory_space<smem>>) -> (i32, i32) {
    %c0_i32 = arith.constant 0 : i32
    %c0_i32_0 = arith.constant 0 : i32
    %c0_i32_1 = arith.constant 0 : i32
    return %c0_i32, %c0_i32_0 : i32, i32
  }
  func.func @transform_4(%arg0: i32, %arg1: memref<1xi32, #tpu.memory_space<smem>>) -> (i32, i32) {
    %c0_i32 = arith.constant 0 : i32
    %c0_i32_0 = arith.constant 0 : i32
    %c0_i32_1 = arith.constant 0 : i32
    return %c0_i32, %c0_i32_0 : i32, i32
  }
  func.func @transform_5(%arg0: i32, %arg1: memref<1xi32, #tpu.memory_space<smem>>) -> (i32, i32) {
    %c0_i32 = arith.constant 0 : i32
    %c0_i32_0 = arith.constant 0 : i32
    return %arg0, %c0_i32 : i32, i32
  }
}

</mosaic_0001>

<llo_original>
// kernel: tpu_custom_call.1
$region0: #{tpu_custom_call.1}
  #allocation0 [shape = 'u32[]', space=smem, size = 0x4, offset = 0x4, fixed_abs, tag = 'smem constant byte address 0x4 - core index']
  #allocation1 [shape = 'u32[144,128]{1,0:T(1,128)}', space=vmem, size = 0x12000, scoped, tag = 'internal scratch']
  #allocation2 [shape = 'bf16[8,16,512]{2,1,0:T(16,128)(2,1)}', space=vmem, size = 0x20000, scoped, tag = 'scratch operand']
  #allocation3 [shape = 's32[1]{0}', space=sflag, size = 0x4, scoped, tag = 'scoped memory for tpu_custom_call.1']
  #allocation4 [shape = 's32[1]{0:T(128)S(6)}', space=smem, size = 0x200, scoped, tag = 'prefetched SMEM operand 0']
  %s0 = inlined_call_operand.<no memory space> [shape: s32[1], index: 0, kind: input, shape index: {}]
  %s1 = inlined_call_operand.hbm [shape: bf16[8,16,16], index: 1, kind: input, shape index: {}]
  %s2 = inlined_call_operand.hbm [shape: s32[16,1], index: 2, kind: input, shape index: {}]
  %s3 = inlined_call_operand.hbm [shape: bf16[16,512], index: 3, kind: input, shape index: {}]
  %s4 = inlined_call_operand.hbm [shape: bf16[128,512], index: 4, kind: input, shape index: {}]
  %s5 = inlined_call_operand.hbm [shape: f32[1,512], index: 5, kind: input, shape index: {}]
  %s6 = inlined_call_operand.hbm [shape: bf16[16,128], index: 6, kind: output, shape index: {}]
  %s7 = sld [smem:[#allocation0]]
  $region61: #{tpu_custom_call.1} parent=0
    _
  %s9 = ssub.s32 1, %s7
  %s10 = scalar_select 0, %s9, %s7
  %11 = sst [smem:[#allocation4]] %s0
  $region1: #{tpu_custom_call.1} parent=0
    #allocation5 [shape = 'u8[32768]{0}', space=vmem, size = 0x8000, scoped, tag = 'input window, operand 1, single buffered']
    #allocation6 [shape = 's32[1]{0}', space=sflag, size = 0x4, scoped, tag = 'scoped memory for tpu_custom_call.1']
    #allocation7 [shape = 's32[1]{0}', space=sflag, size = 0x4, scoped, tag = 'scoped memory for tpu_custom_call.1']
    #allocation8 [shape = 'u8[8192]{0}', space=vmem, size = 0x2000, scoped, tag = 'input window, operand 2, single buffered']
    #allocation9 [shape = 's32[1]{0}', space=sflag, size = 0x4, scoped, tag = 'scoped memory for tpu_custom_call.1']
    #allocation10 [shape = 'u8[16384]{0}', space=vmem, size = 0x4000, scoped, tag = 'input window, operand 3, single buffered']
    #allocation11 [shape = 'u8[131072]{0}', space=vmem, size = 0x20000, scoped, tag = 'input window, operand 4, single buffered']
    #allocation12 [shape = 's32[1]{0}', space=sflag, size = 0x4, scoped, tag = 'scoped memory for tpu_custom_call.1']
    #allocation13 [shape = 'u8[2048]{0}', space=vmem, size = 0x800, scoped, tag = 'input window, operand 5, single buffered']
    #allocation14 [shape = 'u8[4096]{0}', space=vmem, size = 0x1000, scoped, tag = 'output window, operand 0, single buffered']
    %12 = vsyncpa [#allocation6], 0
    %13 = vsyncpa [#allocation9], 0
    %14 = vsyncpa [#allocation12], 0
    %15 = vsyncpa [#allocation7], 0
    // Predicated region
    $region2: #{tpu_custom_call.1} parent=1 // pred_check
      _
    $region3: #{tpu_custom_call.1} parent=1 // pred_check_branch
      %17 = sbr.rel (0) target = $region5
    $region4: #{tpu_custom_call.1} parent=1 // pred_region
      %s19 = ssub.s32 1024, 1024
      %20 = vsyncadd [#allocation6], %s19
      %s21 = sshll.u32 [#allocation5], 4
      %s22 = int_to_ptr.vmem [resolvable:$true] %s21
      %27 = dma.hbm_to_vmem [thread:$0]  %s1, 1024, %s22, [#allocation6], 64, 64, 4
    $region5: #{tpu_custom_call.1} parent=1 // pred_fallthru
      _
    // Predicated region
    $region6: #{tpu_custom_call.1} parent=1 // pred_check
      _
    $region7: #{tpu_custom_call.1} parent=1 // pred_check_branch
      %29 = sbr.rel (0) target = $region9
    $region8: #{tpu_custom_call.1} parent=1 // pred_region
      %s31 = ssub.s32 256, 256
      %32 = vsyncadd [#allocation9], %s31
      %s33 = sshll.u32 [#allocation8], 4
      %s34 = int_to_ptr.vmem [resolvable:$true] %s33
      %39 = dma.hbm_to_vmem [thread:$0]  %s2, 256, %s34, [#allocation9], 128, 128, 8
    $region9: #{tpu_custom_call.1} parent=1 // pred_fallthru
      _
    // Predicated region
    $region10: #{tpu_custom_call.1} parent=1 // pred_check
      _
    $region11: #{tpu_custom_call.1} parent=1 // pred_check_branch
      %41 = sbr.rel (0) target = $region13
    $region12: #{tpu_custom_call.1} parent=1 // pred_region
      %s43 = ssub.s32 512, 512
      %44 = vsyncadd [#allocation9], %s43
      %s45 = sshll.u32 [#allocation10], 4
      %s46 = int_to_ptr.vmem [resolvable:$true] %s45
      %51 = dma.hbm_to_vmem [thread:$0]  %s3, 512, %s46, [#allocation9], 256, 256, 16
    $region13: #{tpu_custom_call.1} parent=1 // pred_fallthru
      _
    // Predicated region
    $region14: #{tpu_custom_call.1} parent=1 // pred_check
      _
    $region15: #{tpu_custom_call.1} parent=1 // pred_check_branch
      %53 = sbr.rel (0) target = $region17
    $region16: #{tpu_custom_call.1} parent=1 // pred_region
      %s55 = ssub.s32 4096, 4096
      %56 = vsyncadd [#allocation12], %s55
      %s57 = sshll.u32 [#allocation11], 4
      %s58 = int_to_ptr.vmem [resolvable:$true] %s57
      %63 = dma.hbm_to_vmem [thread:$0]  %s4, 4096, %s58, [#allocation12], 256, 256, 16
    $region17: #{tpu_custom_call.1} parent=1 // pred_fallthru
      _
    // Predicated region
    $region18: #{tpu_custom_call.1} parent=1 // pred_check
      _
    $region19: #{tpu_custom_call.1} parent=1 // pred_check_branch
      %65 = sbr.rel (0) target = $region21
    $region20: #{tpu_custom_call.1} parent=1 // pred_region
      %s67 = ssub.s32 64, 64
      %68 = vsyncadd [#allocation12], %s67
      %s70 = sshll.u32 [#allocation13], 4
      %s71 = int_to_ptr.vmem [resolvable:$true] %s70
      %73 = dma.hbm_to_vmem [thread:$0]  %s5, 64, %s71, [#allocation12]
    $region21: #{tpu_custom_call.1} parent=1 // pred_fallthru
      _
    // Predicated region
    $region22: #{tpu_custom_call.1} parent=1 // pred_check
      _
    $region23: #{tpu_custom_call.1} parent=1 // pred_check_branch
      %75 = sbr.rel (0) target = $region25
    $region24: #{tpu_custom_call.1} parent=1 // pred_region
      %76 = dma.done [#allocation6], 1024
    $region25: #{tpu_custom_call.1} parent=1 // pred_fallthru
      _
    // Predicated region
    $region26: #{tpu_custom_call.1} parent=1 // pred_check
      _
    $region27: #{tpu_custom_call.1} parent=1 // pred_check_branch
      %78 = sbr.rel (0) target = $region29
    $region28: #{tpu_custom_call.1} parent=1 // pred_region
      %79 = dma.done [#allocation9], 256
    $region29: #{tpu_custom_call.1} parent=1 // pred_fallthru
      _
    // Predicated region
    $region30: #{tpu_custom_call.1} parent=1 // pred_check
      _
    $region31: #{tpu_custom_call.1} parent=1 // pred_check_branch
      %81 = sbr.rel (0) target = $region33
    $region32: #{tpu_custom_call.1} parent=1 // pred_region
      %82 = dma.done [#allocation9], 512
    $region33: #{tpu_custom_call.1} parent=1 // pred_fallthru
      _
    // Predicated region
    $region34: #{tpu_custom_call.1} parent=1 // pred_check
      _
    $region35: #{tpu_custom_call.1} parent=1 // pred_check_branch
      %84 = sbr.rel (0) target = $region37
    $region36: #{tpu_custom_call.1} parent=1 // pred_region
      %85 = dma.done [#allocation12], 4096
    $region37: #{tpu_custom_call.1} parent=1 // pred_fallthru
      _
    // Predicated region
    $region38: #{tpu_custom_call.1} parent=1 // pred_check
      _
    $region39: #{tpu_custom_call.1} parent=1 // pred_check_branch
      %87 = sbr.rel (0) target = $region41
    $region40: #{tpu_custom_call.1} parent=1 // pred_region
      %88 = dma.done [#allocation12], 64
    $region41: #{tpu_custom_call.1} parent=1 // pred_fallthru
      _
    %91 = vst [vmem:[#allocation14] sm:$0xf] 0
    %92 = vst [vmem:[#allocation14 + $0x4] sm:$0xf] 0
    %s93 = sld [smem:[#allocation4]]
    %p94 = scmp.gt.s32.totalorder %s93, 0
    // Predicated region
    $region42: #{tpu_custom_call.1} parent=1 // pred_check
      %p95 = pneg %p94
    $region43: #{tpu_custom_call.1} parent=1 // pred_check_branch
      %97 = sbr.rel (%p95) target = $region45
    $region44: #{tpu_custom_call.1} parent=1 // pred_region
      %v98 = vld [vmem:[#allocation11] sm:$0xff]
      %v99 = vld [vmem:[#allocation11 + $0x8] sm:$0xff]
      %v100 = vld [vmem:[#allocation11 + $0x10] sm:$0xff]
      %v101 = vld [vmem:[#allocation11 + $0x18] sm:$0xff]
      %v102 = vld [vmem:[#allocation11 + $0x20] sm:$0xff]
      %v103 = vld [vmem:[#allocation11 + $0x28] sm:$0xff]
      %v104 = vld [vmem:[#allocation11 + $0x30] sm:$0xff]
      %v105 = vld [vmem:[#allocation11 + $0x38] sm:$0xff]
      %v106 = vld [vmem:[#allocation11 + $0x40] sm:$0xff]
      %v107 = vld [vmem:[#allocation11 + $0x48] sm:$0xff]
      %v108 = vld [vmem:[#allocation11 + $0x50] sm:$0xff]
      %v109 = vld [vmem:[#allocation11 + $0x58] sm:$0xff]
      %v110 = vld [vmem:[#allocation11 + $0x60] sm:$0xff]
      %v111 = vld [vmem:[#allocation11 + $0x68] sm:$0xff]
      %v112 = vld [vmem:[#allocation11 + $0x70] sm:$0xff]
      %v113 = vld [vmem:[#allocation11 + $0x78] sm:$0xff]
      %v114 = vld [vmem:[#allocation11 + $0x80] sm:$0xff]
      %v115 = vld [vmem:[#allocation11 + $0x88] sm:$0xff]
      %v116 = vld [vmem:[#allocation11 + $0x90] sm:$0xff]
      %v117 = vld [vmem:[#allocation11 + $0x98] sm:$0xff]
      %v118 = vld [vmem:[#allocation11 + $0xa0] sm:$0xff]
      %v119 = vld [vmem:[#allocation11 + $0xa8] sm:$0xff]
      %v120 = vld [vmem:[#allocation11 + $0xb0] sm:$0xff]
      %v121 = vld [vmem:[#allocation11 + $0xb8] sm:$0xff]
      %v122 = vld [vmem:[#allocation11 + $0xc0] sm:$0xff]
      %v123 = vld [vmem:[#allocation11 + $0xc8] sm:$0xff]
      %v124 = vld [vmem:[#allocation11 + $0xd0] sm:$0xff]
      %v125 = vld [vmem:[#allocation11 + $0xd8] sm:$0xff]
      %v126 = vld [vmem:[#allocation11 + $0xe0] sm:$0xff]
      %v127 = vld [vmem:[#allocation11 + $0xe8] sm:$0xff]
      %v128 = vld [vmem:[#allocation11 + $0xf0] sm:$0xff]
      %v129 = vld [vmem:[#allocation11 + $0xf8] sm:$0xff]
      %v130 = vld [vmem:[#allocation13] sm:$0xf]
      %v131 = vld [vmem:[#allocation8] sm:$0xff]
      %v132 = vld [vmem:[#allocation8 + $0x8] sm:$0xff]
      %v133 = vld [vmem:[#allocation5] sm:$0xf]
      %v134 = vld [vmem:[#allocation5 + $0x4] sm:$0xf]
      %v135 = vld [vmem:[#allocation5 + $0x8] sm:$0xf]
      %v136 = vld [vmem:[#allocation5 + $0xc] sm:$0xf]
      %v137 = vld [vmem:[#allocation5 + $0x10] sm:$0xf]
      %v138 = vld [vmem:[#allocation5 + $0x14] sm:$0xf]
      %v139 = vld [vmem:[#allocation5 + $0x18] sm:$0xf]
      %v140 = vld [vmem:[#allocation5 + $0x1c] sm:$0xf]
      %v141 = vld [vmem:[#allocation5 + $0x20] sm:$0xf]
      %v142 = vld [vmem:[#allocation5 + $0x24] sm:$0xf]
      %v143 = vld [vmem:[#allocation5 + $0x28] sm:$0xf]
      %v144 = vld [vmem:[#allocation5 + $0x2c] sm:$0xf]
      %v145 = vld [vmem:[#allocation5 + $0x30] sm:$0xf]
      %v146 = vld [vmem:[#allocation5 + $0x34] sm:$0xf]
      %v147 = vld [vmem:[#allocation5 + $0x38] sm:$0xf]
      %v148 = vld [vmem:[#allocation5 + $0x3c] sm:$0xf]
      %v149 = vld [vmem:[#allocation10] sm:$0xff]
      %v150 = vld [vmem:[#allocation10 + $0x8] sm:$0xff]
      %v151 = vld [vmem:[#allocation10 + $0x10] sm:$0xff]
      %v152 = vld [vmem:[#allocation10 + $0x18] sm:$0xff]
      %v169 = vunpack.c.l.b16 %v133
      %v170 = vunpack.c.l.b16 %v134
      %v171 = vunpack.c.l.b16 %v135
      %v172 = vunpack.c.l.b16 %v136
      %v173 = vunpack.c.l.b16 %v137
      %v174 = vunpack.c.l.b16 %v138
      %v175 = vunpack.c.l.b16 %v139
      %v176 = vunpack.c.l.b16 %v140
      %v177 = vunpack.c.l.b16 %v141
      %v178 = vunpack.c.l.b16 %v142
      %v179 = vunpack.c.l.b16 %v143
      %v180 = vunpack.c.l.b16 %v144
      %v181 = vunpack.c.l.b16 %v145
      %v182 = vunpack.c.l.b16 %v146
      %v183 = vunpack.c.l.b16 %v147
      %v184 = vunpack.c.l.b16 %v148
      %v185 = vpack.c.b16 %v170, %v169
      %v186 = vpack.c.b16 %v172, %v171
      %v187 = vpack.c.b16 %v174, %v173
      %v188 = vpack.c.b16 %v176, %v175
      %v189 = vpack.c.b16 %v178, %v177
      %v190 = vpack.c.b16 %v180, %v179
      %v191 = vpack.c.b16 %v182, %v181
      %v192 = vpack.c.b16 %v184, %v183
      %v197 = vunpack.c.l.b16 %v149
      %v198 = vunpack.c.h.b16 %v149
      %v199 = vunpack.c.l.b16 %v150
      %v200 = vunpack.c.h.b16 %v150
      %v201 = vunpack.c.l.b16 %v151
      %v202 = vunpack.c.h.b16 %v151
      %v203 = vunpack.c.l.b16 %v152
      %v204 = vunpack.c.h.b16 %v152
      %v205 = vpack.c.b16 %v201, %v197
      %v206 = vpack.c.b16 %v202, %v198
      %v207 = vpack.c.b16 %v203, %v199
      %v208 = vpack.c.b16 %v204, %v200
      %vm213 = vcmask 130048
      %v215 = vsel %vm213, %v185, 0
      %v218 = vsel %vm213, %v186, 0
      %v221 = vsel %vm213, %v187, 0
      %v224 = vsel %vm213, %v188, 0
      %v227 = vsel %vm213, %v189, 0
      %v230 = vsel %vm213, %v190, 0
      %v233 = vsel %vm213, %v191, 0
      %v236 = vsel %vm213, %v192, 0
      %238 = vmatprep.subr.bf16.mxu0 %v206
      %239 = vmatpush1.bf16.msra.mxu0 %v205
      %240 = vmatprep.subr.bf16.mxu0 0
      %241 = vmatpush1.bf16.msra.mxu0 0
      %242 = vmatprep.subr.bf16.mxu0 0
      %243 = vmatpush1.bf16.msra.mxu0 0
      %244 = vmatprep.subr.bf16.mxu0 0
      %245 = vmatpush1.bf16.msra.mxu0 0
      %246 = vmatprep.subr.bf16.mxu0 0
      %247 = vmatpush1.bf16.msra.mxu0 0
      %248 = vmatprep.subr.bf16.mxu0 0
      %249 = vmatpush1.bf16.msra.mxu0 0
      %250 = vmatprep.subr.bf16.mxu0 0
      %251 = vmatpush1.bf16.msra.mxu0 0
      %252 = vmatprep.subr.bf16.mxu0 0
      %253 = vmatpush1.bf16.msra.mxu0 0
      %254 = vmatprep.subr.bf16.mxu0 0
      %255 = vmatpush1.bf16.msra.mxu0 0
      %256 = vmatprep.subr.bf16.mxu0 0
      %257 = vmatpush1.bf16.msra.mxu0 0
      %258 = vmatprep.subr.bf16.mxu0 0
      %259 = vmatpush1.bf16.msra.mxu0 0
      %260 = vmatprep.subr.bf16.mxu0 0
      %261 = vmatpush1.bf16.msra.mxu0 0
      %262 = vmatprep.subr.bf16.mxu0 0
      %263 = vmatpush1.bf16.msra.mxu0 0
      %264 = vmatprep.subr.bf16.mxu0 0
      %265 = vmatpush1.bf16.msra.mxu0 0
      %266 = vmatprep.subr.bf16.mxu0 0
      %267 = vmatpush1.bf16.msra.mxu0 0
      %268 = vmatprep.subr.bf16.mxu0 0
      %269 = vmatpush1.bf16.msra.mxu0 0
      %270 = vmatprep.mubr.bf16.mxu0 0
      %271 = vmatmul.mubr.bf16.gmra.mrb[0].mxu0 %v215
      %v272 = vpop.f32.mrb[0].mxu0
      %v273 = vadd.f32 0.0, %v272
      %v274 = vpop.f32.mrb[0].mxu0
      %v275 = vadd.f32 0.0, %v274
      %v276 = vpop.f32.mrb[0].mxu0
      %v277 = vadd.f32 0.0, %v276
      %v278 = vpop.f32.mrb[0].mxu0
      %v279 = vadd.f32 0.0, %v278
      %280 = vmatprep.mubr.bf16.mxu0 0
      %281 = vmatmul.mubr.bf16.gmra.mrb[0].mxu0 %v218
      %v282 = vpop.f32.mrb[0].mxu0
      %v283 = vadd.f32 0.0, %v282
      %v284 = vpop.f32.mrb[0].mxu0
      %v285 = vadd.f32 0.0, %v284
      %v286 = vpop.f32.mrb[0].mxu0
      %v287 = vadd.f32 0.0, %v286
      %v288 = vpop.f32.mrb[0].mxu0
      %v289 = vadd.f32 0.0, %v288
      %290 = vmatprep.mubr.bf16.mxu0 0
      %291 = vmatmul.mubr.bf16.gmra.mrb[0].mxu0 %v221
      %v292 = vpop.f32.mrb[0].mxu0
      %v293 = vadd.f32 0.0, %v292
      %v294 = vpop.f32.mrb[0].mxu0
      %v295 = vadd.f32 0.0, %v294
      %v296 = vpop.f32.mrb[0].mxu0
      %v297 = vadd.f32 0.0, %v296
      %v298 = vpop.f32.mrb[0].mxu0
      %v299 = vadd.f32 0.0, %v298
      %300 = vmatprep.mubr.bf16.mxu0 0
      %301 = vmatmul.mubr.bf16.gmra.mrb[0].mxu0 %v224
      %v302 = vpop.f32.mrb[0].mxu0
      %v303 = vadd.f32 0.0, %v302
      %v304 = vpop.f32.mrb[0].mxu0
      %v305 = vadd.f32 0.0, %v304
      %v306 = vpop.f32.mrb[0].mxu0
      %v307 = vadd.f32 0.0, %v306
      %v308 = vpop.f32.mrb[0].mxu0
      %v309 = vadd.f32 0.0, %v308
      %310 = vmatprep.mubr.bf16.mxu0 0
      %311 = vmatmul.mubr.bf16.gmra.mrb[0].mxu0 %v227
      %v312 = vpop.f32.mrb[0].mxu0
      %v313 = vadd.f32 0.0, %v312
      %v314 = vpop.f32.mrb[0].mxu0
      %v315 = vadd.f32 0.0, %v314
      %v316 = vpop.f32.mrb[0].mxu0
      %v317 = vadd.f32 0.0, %v316
      %v318 = vpop.f32.mrb[0].mxu0
      %v319 = vadd.f32 0.0, %v318
      %320 = vmatprep.mubr.bf16.mxu0 0
      %321 = vmatmul.mubr.bf16.gmra.mrb[0].mxu0 %v230
      %v322 = vpop.f32.mrb[0].mxu0
      %v323 = vadd.f32 0.0, %v322
      %v324 = vpop.f32.mrb[0].mxu0
      %v325 = vadd.f32 0.0, %v324
      %v326 = vpop.f32.mrb[0].mxu0
      %v327 = vadd.f32 0.0, %v326
      %v328 = vpop.f32.mrb[0].mxu0
      %v329 = vadd.f32 0.0, %v328
      %330 = vmatprep.mubr.bf16.mxu0 0
      %331 = vmatmul.mubr.bf16.gmra.mrb[0].mxu0 %v233
      %v332 = vpop.f32.mrb[0].mxu0
      %v333 = vadd.f32 0.0, %v332
      %v334 = vpop.f32.mrb[0].mxu0
      %v335 = vadd.f32 0.0, %v334
      %v336 = vpop.f32.mrb[0].mxu0
      %v337 = vadd.f32 0.0, %v336
      %v338 = vpop.f32.mrb[0].mxu0
      %v339 = vadd.f32 0.0, %v338
      %340 = vmatprep.mubr.bf16.mxu0 0
      %341 = vmatmul.mubr.bf16.gmra.mrb[0].mxu0 %v236
      %v342 = vpop.f32.mrb[0].mxu0
      %v343 = vadd.f32 0.0, %v342
      %v344 = vpop.f32.mrb[0].mxu0
      %v345 = vadd.f32 0.0, %v344
      %v346 = vpop.f32.mrb[0].mxu0
      %v347 = vadd.f32 0.0, %v346
      %v348 = vpop.f32.mrb[0].mxu0
      %v349 = vadd.f32 0.0, %v348
      %350 = vdwg.mxu0
      %351 = vmatprep.subr.bf16.mxu0 %v208
      %352 = vmatpush1.bf16.msra.mxu0 %v207
      %353 = vmatprep.subr.bf16.mxu0 0
      %354 = vmatpush1.bf16.msra.mxu0 0
      %355 = vmatprep.subr.bf16.mxu0 0
      %356 = vmatpush1.bf16.msra.mxu0 0
      %357 = vmatprep.subr.bf16.mxu0 0
      %358 = vmatpush1.bf16.msra.mxu0 0
      %359 = vmatprep.subr.bf16.mxu0 0
      %360 = vmatpush1.bf16.msra.mxu0 0
      %361 = vmatprep.subr.bf16.mxu0 0
      %362 = vmatpush1.bf16.msra.mxu0 0
      %363 = vmatprep.subr.bf16.mxu0 0
      %364 = vmatpush1.bf16.msra.mxu0 0
      %365 = vmatprep.subr.bf16.mxu0 0
      %366 = vmatpush1.bf16.msra.mxu0 0
      %367 = vmatprep.subr.bf16.mxu0 0
      %368 = vmatpush1.bf16.msra.mxu0 0
      %369 = vmatprep.subr.bf16.mxu0 0
      %370 = vmatpush1.bf16.msra.mxu0 0
      %371 = vmatprep.subr.bf16.mxu0 0
      %372 = vmatpush1.bf16.msra.mxu0 0
      %373 = vmatprep.subr.bf16.mxu0 0
      %374 = vmatpush1.bf16.msra.mxu0 0
      %375 = vmatprep.subr.bf16.mxu0 0
      %376 = vmatpush1.bf16.msra.mxu0 0
      %377 = vmatprep.subr.bf16.mxu0 0
      %378 = vmatpush1.bf16.msra.mxu0 0
      %379 = vmatprep.subr.bf16.mxu0 0
      %380 = vmatpush1.bf16.msra.mxu0 0
      %381 = vmatprep.subr.bf16.mxu0 0
      %382 = vmatpush1.bf16.msra.mxu0 0
      %383 = vmatprep.mubr.bf16.mxu0 0
      %384 = vmatmul.mubr.bf16.gmra.mrb[0].mxu0 %v215
      %v385 = vpop.f32.mrb[0].mxu0
      %v386 = vadd.f32 0.0, %v385
      %v387 = vpop.f32.mrb[0].mxu0
      %v388 = vadd.f32 0.0, %v387
      %v389 = vpop.f32.mrb[0].mxu0
      %v390 = vadd.f32 0.0, %v389
      %v391 = vpop.f32.mrb[0].mxu0
      %v392 = vadd.f32 0.0, %v391
      %393 = vmatprep.mubr.bf16.mxu0 0
      %394 = vmatmul.mubr.bf16.gmra.mrb[0].mxu0 %v218
      %v395 = vpop.f32.mrb[0].mxu0
      %v396 = vadd.f32 0.0, %v395
      %v397 = vpop.f32.mrb[0].mxu0
      %v398 = vadd.f32 0.0, %v397
      %v399 = vpop.f32.mrb[0].mxu0
      %v400 = vadd.f32 0.0, %v399
      %v401 = vpop.f32.mrb[0].mxu0
      %v402 = vadd.f32 0.0, %v401
      %403 = vmatprep.mubr.bf16.mxu0 0
      %404 = vmatmul.mubr.bf16.gmra.mrb[0].mxu0 %v221
      %v405 = vpop.f32.mrb[0].mxu0
      %v406 = vadd.f32 0.0, %v405
      %v407 = vpop.f32.mrb[0].mxu0
      %v408 = vadd.f32 0.0, %v407
      %v409 = vpop.f32.mrb[0].mxu0
      %v410 = vadd.f32 0.0, %v409
      %v411 = vpop.f32.mrb[0].mxu0
      %v412 = vadd.f32 0.0, %v411
      %413 = vmatprep.mubr.bf16.mxu0 0
      %414 = vmatmul.mubr.bf16.gmra.mrb[0].mxu0 %v224
      %v415 = vpop.f32.mrb[0].mxu0
      %v416 = vadd.f32 0.0, %v415
      %v417 = vpop.f32.mrb[0].mxu0
      %v418 = vadd.f32 0.0, %v417
      %v419 = vpop.f32.mrb[0].mxu0
      %v420 = vadd.f32 0.0, %v419
      %v421 = vpop.f32.mrb[0].mxu0
      %v422 = vadd.f32 0.0, %v421
      %423 = vmatprep.mubr.bf16.mxu0 0
      %424 = vmatmul.mubr.bf16.gmra.mrb[0].mxu0 %v227
      %v425 = vpop.f32.mrb[0].mxu0
      %v426 = vadd.f32 0.0, %v425
      %v427 = vpop.f32.mrb[0].mxu0
      %v428 = vadd.f32 0.0, %v427
      %v429 = vpop.f32.mrb[0].mxu0
      %v430 = vadd.f32 0.0, %v429
      %v431 = vpop.f32.mrb[0].mxu0
      %v432 = vadd.f32 0.0, %v431
      %433 = vmatprep.mubr.bf16.mxu0 0
      %434 = vmatmul.mubr.bf16.gmra.mrb[0].mxu0 %v230
      %v435 = vpop.f32.mrb[0].mxu0
      %v436 = vadd.f32 0.0, %v435
      %v437 = vpop.f32.mrb[0].mxu0
      %v438 = vadd.f32 0.0, %v437
      %v439 = vpop.f32.mrb[0].mxu0
      %v440 = vadd.f32 0.0, %v439
      %v441 = vpop.f32.mrb[0].mxu0
      %v442 = vadd.f32 0.0, %v441
      %443 = vmatprep.mubr.bf16.mxu0 0
      %444 = vmatmul.mubr.bf16.gmra.mrb[0].mxu0 %v233
      %v445 = vpop.f32.mrb[0].mxu0
      %v446 = vadd.f32 0.0, %v445
      %v447 = vpop.f32.mrb[0].mxu0
      %v448 = vadd.f32 0.0, %v447
      %v449 = vpop.f32.mrb[0].mxu0
      %v450 = vadd.f32 0.0, %v449
      %v451 = vpop.f32.mrb[0].mxu0
      %v452 = vadd.f32 0.0, %v451
      %453 = vmatprep.mubr.bf16.mxu0 0
      %454 = vmatmul.mubr.bf16.gmra.mrb[0].mxu0 %v236
      %v455 = vpop.f32.mrb[0].mxu0
      %v456 = vadd.f32 0.0, %v455
      %v457 = vpop.f32.mrb[0].mxu0
      %v458 = vadd.f32 0.0, %v457
      %v459 = vpop.f32.mrb[0].mxu0
      %v460 = vadd.f32 0.0, %v459
      %v461 = vpop.f32.mrb[0].mxu0
      %v462 = vadd.f32 0.0, %v461
      %463 = vdwg.mxu0
      %v464 = vpack.c.bf16 %v277, %v273
      %v465 = vpack.c.bf16 %v279, %v275
      %v466 = vpack.c.bf16 %v390, %v386
      %v467 = vpack.c.bf16 %v392, %v388
      %v468 = vpack.c.bf16 %v287, %v283
      %v469 = vpack.c.bf16 %v289, %v285
      %v470 = vpack.c.bf16 %v400, %v396
      %v471 = vpack.c.bf16 %v402, %v398
      %v472 = vpack.c.bf16 %v297, %v293
      %v473 = vpack.c.bf16 %v299, %v295
      %v474 = vpack.c.bf16 %v410, %v406
      %v475 = vpack.c.bf16 %v412, %v408
      %v476 = vpack.c.bf16 %v307, %v303
      %v477 = vpack.c.bf16 %v309, %v305
      %v478 = vpack.c.bf16 %v420, %v416
      %v479 = vpack.c.bf16 %v422, %v418
      %v480 = vpack.c.bf16 %v317, %v313
      %v481 = vpack.c.bf16 %v319, %v315
      %v482 = vpack.c.bf16 %v430, %v426
      %v483 = vpack.c.bf16 %v432, %v428
      %v484 = vpack.c.bf16 %v327, %v323
      %v485 = vpack.c.bf16 %v329, %v325
      %v486 = vpack.c.bf16 %v440, %v436
      %v487 = vpack.c.bf16 %v442, %v438
      %v488 = vpack.c.bf16 %v337, %v333
      %v489 = vpack.c.bf16 %v339, %v335
      %v490 = vpack.c.bf16 %v450, %v446
      %v491 = vpack.c.bf16 %v452, %v448
      %v492 = vpack.c.bf16 %v347, %v343
      %v493 = vpack.c.bf16 %v349, %v345
      %v494 = vpack.c.bf16 %v460, %v456
      %v495 = vpack.c.bf16 %v462, %v458
      %496 = vst [vmem:[#allocation2] sm:$0xff] %v464
      %497 = vst [vmem:[#allocation2 + $0x8] sm:$0xff] %v465
      %498 = vst [vmem:[#allocation2 + $0x10] sm:$0xff] %v466
      %499 = vst [vmem:[#allocation2 + $0x18] sm:$0xff] %v467
      %500 = vst [vmem:[#allocation2 + $0x20] sm:$0xff] %v468
      %501 = vst [vmem:[#allocation2 + $0x28] sm:$0xff] %v469
      %502 = vst [vmem:[#allocation2 + $0x30] sm:$0xff] %v470
      %503 = vst [vmem:[#allocation2 + $0x38] sm:$0xff] %v471
      %504 = vst [vmem:[#allocation2 + $0x40] sm:$0xff] %v472
      %505 = vst [vmem:[#allocation2 + $0x48] sm:$0xff] %v473
      %506 = vst [vmem:[#allocation2 + $0x50] sm:$0xff] %v474
      %507 = vst [vmem:[#allocation2 + $0x58] sm:$0xff] %v475
      %508 = vst [vmem:[#allocation2 + $0x60] sm:$0xff] %v476
      %509 = vst [vmem:[#allocation2 + $0x68] sm:$0xff] %v477
      %510 = vst [vmem:[#allocation2 + $0x70] sm:$0xff] %v478
      %511 = vst [vmem:[#allocation2 + $0x78] sm:$0xff] %v479
      %512 = vst [vmem:[#allocation2 + $0x80] sm:$0xff] %v480
      %513 = vst [vmem:[#allocation2 + $0x88] sm:$0xff] %v481
      %514 = vst [vmem:[#allocation2 + $0x90] sm:$0xff] %v482
      %515 = vst [vmem:[#allocation2 + $0x98] sm:$0xff] %v483
      %516 = vst [vmem:[#allocation2 + $0xa0] sm:$0xff] %v484
      %517 = vst [vmem:[#allocation2 + $0xa8] sm:$0xff] %v485
      %518 = vst [vmem:[#allocation2 + $0xb0] sm:$0xff] %v486
      %519 = vst [vmem:[#allocation2 + $0xb8] sm:$0xff] %v487
      %520 = vst [vmem:[#allocation2 + $0xc0] sm:$0xff] %v488
      %521 = vst [vmem:[#allocation2 + $0xc8] sm:$0xff] %v489
      %522 = vst [vmem:[#allocation2 + $0xd0] sm:$0xff] %v490
      %523 = vst [vmem:[#allocation2 + $0xd8] sm:$0xff] %v491
      %524 = vst [vmem:[#allocation2 + $0xe0] sm:$0xff] %v492
      %525 = vst [vmem:[#allocation2 + $0xe8] sm:$0xff] %v493
      %526 = vst [vmem:[#allocation2 + $0xf0] sm:$0xff] %v494
      %527 = vst [vmem:[#allocation2 + $0xf8] sm:$0xff] %v495
      // While loop
      $region46: #{tpu_custom_call.1} parent=44 // loop_pre_header
        _
      $region47: #{tpu_custom_call.1} parent=44 // loop_header
        %s529 = sphi 0, %s531
        %p530 = scmp.ge.s32.totalorder %s529, %s93
        %v534 = vphi 0.0, %v887
        %v535 = vphi 0.0, %v888
        %v536 = vphi 0.0, %v889
        %v537 = vphi 0.0, %v890
      $region48: #{tpu_custom_call.1} parent=44 // loop_header_branch
        %533 = sbr.rel (%p530) target = $region52
      $region49: #{tpu_custom_call.1} parent=44 // loop_body
        %s538 = smul.u32 %s529, 4
        %s539 = smul.addr %s538, 8
        %s540 = scalar_lea.vmem [#allocation2], %s539
        %v541 = vld [vmem:[%s540] sm:$0xff]
        %v542 = vld [vmem:[%s540 + $0x8] sm:$0xff]
        %v543 = vld [vmem:[%s540 + $0x10] sm:$0xff]
        %v544 = vld [vmem:[%s540 + $0x18] sm:$0xff]
        %v545 = vunpack.c.l.bf16 %v541
        %v546 = vunpack.c.l.bf16 %v542
        %v547 = vunpack.c.l.bf16 %v543
        %v548 = vunpack.c.l.bf16 %v544
        %v549 = vunpack.c.h.bf16 %v541
        %v550 = vunpack.c.h.bf16 %v542
        %v551 = vunpack.c.h.bf16 %v543
        %v552 = vunpack.c.h.bf16 %v544
        %v554 = vlaneseq
        %v555 = vshrl.u32 %v554, 7
        %v556 = vsub.s32 0, %v555
        %v557 = vrot.slane %v130, %v556
        %v558 = vlaneseq
        %v559 = vshrl.u32 %v558, 7
        %v560 = vsub.s32 1, %v559
        %v561 = vrot.slane %v130, %v560
        %v562 = vlaneseq
        %v563 = vshrl.u32 %v562, 7
        %v564 = vsub.s32 2, %v563
        %v565 = vrot.slane %v130, %v564
        %v566 = vlaneseq
        %v567 = vshrl.u32 %v566, 7
        %v568 = vsub.s32 3, %v567
        %v569 = vrot.slane %v130, %v568
        %v574 = vadd.f32 %v545, %v557
        %v575 = vadd.f32 %v546, %v561
        %v576 = vadd.f32 %v547, %v565
        %v577 = vadd.f32 %v548, %v569
        %v578 = vadd.f32 %v549, %v557
        %v579 = vadd.f32 %v550, %v561
        %v580 = vadd.f32 %v551, %v565
        %v581 = vadd.f32 %v552, %v569
        %v582 = vpack.c.bf16 %v535, %v534
        %v615 = vunpack.c.l.b16 %v98
        %v616 = vunpack.c.h.b16 %v98
        %v617 = vunpack.c.l.b16 %v99
        %v618 = vunpack.c.h.b16 %v99
        %v619 = vunpack.c.l.b16 %v100
        %v620 = vunpack.c.h.b16 %v100
        %v621 = vunpack.c.l.b16 %v101
        %v622 = vunpack.c.h.b16 %v101
        %v623 = vunpack.c.l.b16 %v102
        %v624 = vunpack.c.h.b16 %v102
        %v625 = vunpack.c.l.b16 %v103
        %v626 = vunpack.c.h.b16 %v103
        %v627 = vunpack.c.l.b16 %v104
        %v628 = vunpack.c.h.b16 %v104
        %v629 = vunpack.c.l.b16 %v105
        %v630 = vunpack.c.h.b16 %v105
        %v631 = vunpack.c.l.b16 %v106
        %v632 = vunpack.c.h.b16 %v106
        %v633 = vunpack.c.l.b16 %v107
        %v634 = vunpack.c.h.b16 %v107
        %v635 = vunpack.c.l.b16 %v108
        %v636 = vunpack.c.h.b16 %v108
        %v637 = vunpack.c.l.b16 %v109
        %v638 = vunpack.c.h.b16 %v109
        %v639 = vunpack.c.l.b16 %v110
        %v640 = vunpack.c.h.b16 %v110
        %v641 = vunpack.c.l.b16 %v111
        %v642 = vunpack.c.h.b16 %v111
        %v643 = vunpack.c.l.b16 %v112
        %v644 = vunpack.c.h.b16 %v112
        %v645 = vunpack.c.l.b16 %v113
        %v646 = vunpack.c.h.b16 %v113
        %v647 = vunpack.c.l.b16 %v114
        %v648 = vunpack.c.h.b16 %v114
        %v649 = vunpack.c.l.b16 %v115
        %v650 = vunpack.c.h.b16 %v115
        %v651 = vunpack.c.l.b16 %v116
        %v652 = vunpack.c.h.b16 %v116
        %v653 = vunpack.c.l.b16 %v117
        %v654 = vunpack.c.h.b16 %v117
        %v655 = vunpack.c.l.b16 %v118
        %v656 = vunpack.c.h.b16 %v118
        %v657 = vunpack.c.l.b16 %v119
        %v658 = vunpack.c.h.b16 %v119
        %v659 = vunpack.c.l.b16 %v120
        %v660 = vunpack.c.h.b16 %v120
        %v661 = vunpack.c.l.b16 %v121
        %v662 = vunpack.c.h.b16 %v121
        %v663 = vunpack.c.l.b16 %v122
        %v664 = vunpack.c.h.b16 %v122
        %v665 = vunpack.c.l.b16 %v123
        %v666 = vunpack.c.h.b16 %v123
        %v667 = vunpack.c.l.b16 %v124
        %v668 = vunpack.c.h.b16 %v124
        %v669 = vunpack.c.l.b16 %v125
        %v670 = vunpack.c.h.b16 %v125
        %v671 = vunpack.c.l.b16 %v126
        %v672 = vunpack.c.h.b16 %v126
        %v673 = vunpack.c.l.b16 %v127
        %v674 = vunpack.c.h.b16 %v127
        %v675 = vunpack.c.l.b16 %v128
        %v676 = vunpack.c.h.b16 %v128
        %v677 = vunpack.c.l.b16 %v129
        %v678 = vunpack.c.h.b16 %v129
        %v679 = vpack.c.b16 %v619, %v615
        %v680 = vpack.c.b16 %v620, %v616
        %v681 = vpack.c.b16 %v621, %v617
        %v682 = vpack.c.b16 %v622, %v618
        %v683 = vpack.c.b16 %v627, %v623
        %v684 = vpack.c.b16 %v628, %v624
        %v685 = vpack.c.b16 %v629, %v625
        %v686 = vpack.c.b16 %v630, %v626
        %v687 = vpack.c.b16 %v635, %v631
        %v688 = vpack.c.b16 %v636, %v632
        %v689 = vpack.c.b16 %v637, %v633
        %v690 = vpack.c.b16 %v638, %v634
        %v691 = vpack.c.b16 %v643, %v639
        %v692 = vpack.c.b16 %v644, %v640
        %v693 = vpack.c.b16 %v645, %v641
        %v694 = vpack.c.b16 %v646, %v642
        %v695 = vpack.c.b16 %v651, %v647
        %v696 = vpack.c.b16 %v652, %v648
        %v697 = vpack.c.b16 %v653, %v649
        %v698 = vpack.c.b16 %v654, %v650
        %v699 = vpack.c.b16 %v659, %v655
        %v700 = vpack.c.b16 %v660, %v656
        %v701 = vpack.c.b16 %v661, %v657
        %v702 = vpack.c.b16 %v662, %v658
        %v703 = vpack.c.b16 %v667, %v663
        %v704 = vpack.c.b16 %v668, %v664
        %v705 = vpack.c.b16 %v669, %v665
        %v706 = vpack.c.b16 %v670, %v666
        %v707 = vpack.c.b16 %v675, %v671
        %v708 = vpack.c.b16 %v676, %v672
        %v709 = vpack.c.b16 %v677, %v673
        %v710 = vpack.c.b16 %v678, %v674
        %743 = vmatprep.subr.bf16.mxu0 %v680
        %744 = vmatpush1.bf16.msra.mxu0 %v679
        %745 = vmatprep.subr.bf16.mxu0 %v684
        %746 = vmatpush1.bf16.msra.mxu0 %v683
        %747 = vmatprep.subr.bf16.mxu0 %v688
        %748 = vmatpush1.bf16.msra.mxu0 %v687
        %749 = vmatprep.subr.bf16.mxu0 %v692
        %750 = vmatpush1.bf16.msra.mxu0 %v691
        %751 = vmatprep.subr.bf16.mxu0 %v696
        %752 = vmatpush1.bf16.msra.mxu0 %v695
        %753 = vmatprep.subr.bf16.mxu0 %v700
        %754 = vmatpush1.bf16.msra.mxu0 %v699
        %755 = vmatprep.subr.bf16.mxu0 %v704
        %756 = vmatpush1.bf16.msra.mxu0 %v703
        %757 = vmatprep.subr.bf16.mxu0 %v708
        %758 = vmatpush1.bf16.msra.mxu0 %v707
        %759 = vmatprep.subr.bf16.mxu0 0
        %760 = vmatpush1.bf16.msra.mxu0 0
        %761 = vmatprep.subr.bf16.mxu0 0
        %762 = vmatpush1.bf16.msra.mxu0 0
        %763 = vmatprep.subr.bf16.mxu0 0
        %764 = vmatpush1.bf16.msra.mxu0 0
        %765 = vmatprep.subr.bf16.mxu0 0
        %766 = vmatpush1.bf16.msra.mxu0 0
        %767 = vmatprep.subr.bf16.mxu0 0
        %768 = vmatpush1.bf16.msra.mxu0 0
        %769 = vmatprep.subr.bf16.mxu0 0
        %770 = vmatpush1.bf16.msra.mxu0 0
        %771 = vmatprep.subr.bf16.mxu0 0
        %772 = vmatpush1.bf16.msra.mxu0 0
        %773 = vmatprep.subr.bf16.mxu0 0
        %774 = vmatpush1.bf16.msra.mxu0 0
        %775 = vmatprep.mubr.bf16.mxu0 0
        %776 = vmatmul.mubr.bf16.gmra.mrb[0].mxu0 %v582
        %v777 = vpop.f32.mrb[0].mxu0
        %v778 = vadd.f32 0.0, %v777
        %v779 = vpop.f32.mrb[0].mxu0
        %v780 = vadd.f32 0.0, %v779
        %v781 = vpop.f32.mrb[0].mxu0
        %v782 = vadd.f32 0.0, %v781
        %v783 = vpop.f32.mrb[0].mxu0
        %v784 = vadd.f32 0.0, %v783
        %785 = vdwg.mxu0
        %786 = vmatprep.subr.bf16.mxu0 %v682
        %787 = vmatpush1.bf16.msra.mxu0 %v681
        %788 = vmatprep.subr.bf16.mxu0 %v686
        %789 = vmatpush1.bf16.msra.mxu0 %v685
        %790 = vmatprep.subr.bf16.mxu0 %v690
        %791 = vmatpush1.bf16.msra.mxu0 %v689
        %792 = vmatprep.subr.bf16.mxu0 %v694
        %793 = vmatpush1.bf16.msra.mxu0 %v693
        %794 = vmatprep.subr.bf16.mxu0 %v698
        %795 = vmatpush1.bf16.msra.mxu0 %v697
        %796 = vmatprep.subr.bf16.mxu0 %v702
        %797 = vmatpush1.bf16.msra.mxu0 %v701
        %798 = vmatprep.subr.bf16.mxu0 %v706
        %799 = vmatpush1.bf16.msra.mxu0 %v705
        %800 = vmatprep.subr.bf16.mxu0 %v710
        %801 = vmatpush1.bf16.msra.mxu0 %v709
        %802 = vmatprep.subr.bf16.mxu0 0
        %803 = vmatpush1.bf16.msra.mxu0 0
        %804 = vmatprep.subr.bf16.mxu0 0
        %805 = vmatpush1.bf16.msra.mxu0 0
        %806 = vmatprep.subr.bf16.mxu0 0
        %807 = vmatpush1.bf16.msra.mxu0 0
        %808 = vmatprep.subr.bf16.mxu0 0
        %809 = vmatpush1.bf16.msra.mxu0 0
        %810 = vmatprep.subr.bf16.mxu0 0
        %811 = vmatpush1.bf16.msra.mxu0 0
        %812 = vmatprep.subr.bf16.mxu0 0
        %813 = vmatpush1.bf16.msra.mxu0 0
        %814 = vmatprep.subr.bf16.mxu0 0
        %815 = vmatpush1.bf16.msra.mxu0 0
        %816 = vmatprep.subr.bf16.mxu0 0
        %817 = vmatpush1.bf16.msra.mxu0 0
        %818 = vmatprep.mubr.bf16.mxu0 0
        %819 = vmatmul.mubr.bf16.gmra.mrb[0].mxu0 %v582
        %v820 = vpop.f32.mrb[0].mxu0
        %v821 = vadd.f32 0.0, %v820
        %v822 = vpop.f32.mrb[0].mxu0
        %v823 = vadd.f32 0.0, %v822
        %v824 = vpop.f32.mrb[0].mxu0
        %v825 = vadd.f32 0.0, %v824
        %v826 = vpop.f32.mrb[0].mxu0
        %v827 = vadd.f32 0.0, %v826
        %828 = vdwg.mxu0
        %v829 = vadd.f32 %v574, %v778
        %v830 = vadd.f32 %v575, %v780
        %v831 = vadd.f32 %v576, %v821
        %v832 = vadd.f32 %v577, %v823
        %v833 = vadd.f32 %v578, %v782
        %v834 = vadd.f32 %v579, %v784
        %v835 = vadd.f32 %v580, %v825
        %v836 = vadd.f32 %v581, %v827
        %v837 = vpack.c.bf16 %v833, %v829
        %v838 = vpack.c.bf16 %v834, %v830
        %v839 = vpack.c.bf16 %v835, %v831
        %v840 = vpack.c.bf16 %v836, %v832
        %v841 = vmul.bf16 %v837, 1056980736
        %v842 = vtanh.bf16.pop %v841
        %v843 = vmul.bf16 %v842, 1056980736
        %v844 = vadd.bf16 %v843, 1056980736
        %v845 = vmul.bf16 %v838, 1056980736
        %v846 = vtanh.bf16.pop %v845
        %v847 = vmul.bf16 %v846, 1056980736
        %v848 = vadd.bf16 %v847, 1056980736
        %v849 = vtanh.bf16.pop %v839
        %v850 = vmul.bf16 %v840, 1056980736
        %v851 = vtanh.bf16.pop %v850
        %v852 = vmul.bf16 %v851, 1056980736
        %v853 = vadd.bf16 %v852, 1056980736
        %v854 = vunpack.c.l.bf16 %v848
        %v855 = vunpack.c.h.bf16 %v848
        %v856 = vmul.f32 %v854, %v536
        %v857 = vmul.f32 %v855, %v537
        %v858 = vunpack.c.l.bf16 %v844
        %v859 = vunpack.c.h.bf16 %v844
        %v860 = vunpack.c.l.bf16 %v849
        %v861 = vunpack.c.h.bf16 %v849
        %v862 = vmul.f32 %v858, %v860
        %v863 = vmul.f32 %v859, %v861
        %v864 = vadd.f32 %v856, %v862
        %v865 = vadd.f32 %v857, %v863
        %v866 = vunpack.c.l.bf16 %v853
        %v867 = vunpack.c.h.bf16 %v853
        %v868 = vpack.c.bf16 %v865, %v864
        %v869 = vtanh.bf16.pop %v868
        %v870 = vunpack.c.l.bf16 %v869
        %v871 = vunpack.c.h.bf16 %v869
        %v872 = vmul.f32 %v866, %v870
        %v873 = vmul.f32 %v867, %v871
        %v874 = vstv %s529
        %vm875 = vcmp.gt.s32.totalorder %v131, %v874
        %vm876 = vcmp.gt.s32.totalorder %v132, %v874
        %v877 = vsel %vm875, 1, 0
        %v878 = vsel %vm876, 1, 0
        %879 = vset.pattern.permute.xlu0 0
        %880 = vperm.xlu0 %879, %v877
        %v881 = vpop.permute.xlu0 %880
        %882 = vset.pattern.permute.xlu0 0
        %883 = vperm.xlu0 %882, %v878
        %v884 = vpop.permute.xlu0 %883
        %vm885 = vcmp.eq.s32.totalorder %v881, 1
        %vm886 = vcmp.eq.s32.totalorder %v884, 1
        %v887 = vsel %vm885, %v872, %v534
        %v888 = vsel %vm886, %v873, %v535
        %v889 = vsel %vm885, %v864, %v536
        %v890 = vsel %vm886, %v865, %v537
      $region50: #{tpu_custom_call.1} parent=44 // loop_footer
        %s531 = sadd.s32 %s529, 1
      $region51: #{tpu_custom_call.1} parent=44 // loop_footer_branch
        %528 = sbr.rel target = $region47
      $region52: #{tpu_custom_call.1} parent=44 // loop_exit
        _
      %v891 = vpack.c.bf16 %v535, %v534
      %v893 = vunpack.c.l.b16 %v891
      %v894 = vunpack.c.h.b16 %v891
      %v895 = vpack.c.b16 %v893, %v893
      %v896 = vpack.c.b16 %v894, %v894
      %899 = vst [vmem:[#allocation14] sm:$0xf] %v895
      %900 = vst [vmem:[#allocation14 + $0x4] sm:$0xf] %v896
    $region45: #{tpu_custom_call.1} parent=1 // pred_fallthru
      _
    // Predicated region
    $region53: #{tpu_custom_call.1} parent=1 // pred_check
      _
    $region54: #{tpu_custom_call.1} parent=1 // pred_check_branch
      %902 = sbr.rel (0) target = $region56
    $region55: #{tpu_custom_call.1} parent=1 // pred_region
      %s904 = ssub.s32 128, 128
      %905 = vsyncadd [#allocation7], %s904
      %s906 = sshll.u32 [#allocation14], 4
      %s907 = int_to_ptr.vmem [resolvable:$true] %s906
      %912 = dma.vmem_to_hbm [thread:$0]  %s907, 128, %s6, [#allocation7], 64, 64, 4
    $region56: #{tpu_custom_call.1} parent=1 // pred_fallthru
      _
    // Predicated region
    $region57: #{tpu_custom_call.1} parent=1 // pred_check
      _
    $region58: #{tpu_custom_call.1} parent=1 // pred_check_branch
      %914 = sbr.rel (0) target = $region60
    $region59: #{tpu_custom_call.1} parent=1 // pred_region
      %915 = dma.done [#allocation7], 128
    $region60: #{tpu_custom_call.1} parent=1 // pred_fallthru
      _
    %916 = vsyncpa [#allocation6], 1
    %917 = vsyncpa [#allocation9], 1
    %918 = vsyncpa [#allocation12], 1
    %919 = vsyncpa [#allocation7], 1

</llo_original>
